<compile_context>
chip_gen: v6e
topology: v6e:2x2x1
jax: 0.10.0
libtpu: 0.0.40
codegen_flags: <defaults>
</compile_context>

<pallas_src>
import math

import jax
import jax.numpy as jnp
from jax.experimental import pallas as pl
from jax.experimental.pallas import tpu as pltpu


# ----------------------------------------------------------------------------
# Kernel: one (block_rows, lane) tile per grid step, elementwise tanh(x^3).
#   2 VPU multiplies + 1 EUP tanh per element; HBM-bandwidth bound.
# ----------------------------------------------------------------------------
def tanh3_kernel(x_ref, o_ref):
    x = x_ref[...]
    o_ref[...] = jnp.tanh(x * x * x)


def _round_up(a: int, b: int) -> int:
    return -(-a // b) * b


def tanh3(x, *, lane: int = 512, target_block_bytes: int = 2 << 20,
          min_grid_steps: int = 8):
    """tanh(x**3), elementwise, for any float input shape/dtype."""
    orig_shape = x.shape
    dtype = x.dtype
    itemsize = jnp.dtype(dtype).itemsize
    n = math.prod(orig_shape) if orig_shape else 1

    # Dtype-aware sublane granularity: 8 (f32) / 16 (bf16) / 32 (int8, fp8).
    sublane = max(8, 32 // itemsize)

    xf = jnp.reshape(x, (-1,))

    # Lane-aligned prefix handled by the kernel; tiny ragged tail by plain XLA.
    main = (n // lane) * lane
    if main == 0:
        # Input smaller than one lane row -- not worth a kernel launch.
        return jnp.tanh(x * x * x)

    rows = main // lane

    # ~target_block_bytes per block, rounded to the sublane granule.
    max_block_rows = max(
        sublane,
        (target_block_bytes // (lane * itemsize) // sublane) * sublane,
    )

    if rows <= max_block_rows:
        # Single block covering all rows (block dim == full array dim: legal
        # even when `rows` is not a multiple of the sublane granule).
        block_rows = rows
    else:
        # Big blocks, but keep >= min_grid_steps steps so megacore (v7x's two
        # TensorCores) gets work on the "parallel" axis.
        rows_per_step = _round_up(pl.cdiv(rows, min_grid_steps), sublane)
        block_rows = min(max_block_rows, rows_per_step)

    grid = (pl.cdiv(rows, block_rows),)

    x2d = (xf if main == n else xf[:main]).reshape(rows, lane)

    cost = pl.CostEstimate(
        flops=2 * rows * lane,            # two multiplies per element
        transcendentals=rows * lane,      # one tanh per element
        bytes_accessed=2 * rows * lane * itemsize,
    )

    out2d = pl.pallas_call(
        tanh3_kernel,
        out_shape=jax.ShapeDtypeStruct((rows, lane), dtype),
        grid_spec=pltpu.PrefetchScalarGridSpec(
            num_scalar_prefetch=0,
            grid=grid,
            in_specs=[pl.BlockSpec((block_rows, lane), lambda i: (i, 0))],
            out_specs=pl.BlockSpec((block_rows, lane), lambda i: (i, 0)),
        ),
        compiler_params=pltpu.CompilerParams(
            dimension_semantics=("parallel",),
            vmem_limit_bytes=32 << 20,
        ),
        cost_estimate=cost,
    )(x2d)

    if main == n:
        # Aligned fast path: no pad, no slice, no concat -- just a reshape.
        return out2d.reshape(orig_shape)

    # Ragged tail (< lane elements): compute with plain XLA and stitch back.
    tail = xf[main:]
    out_tail = jnp.tanh(tail * tail * tail)
    return jnp.concatenate([out2d.reshape(-1), out_tail]).reshape(orig_shape)


if __name__ == "__main__":
    # Small, deterministic example input consistent with the module's forward
    # (Tanh3 accepts any tensor; use a 4-D activation-like shape).
    key = jax.random.PRNGKey(0)
    x = jax.random.normal(key, (2, 4, 16, 16), dtype=jnp.float32)

    out = tanh3(x)
    jax.block_until_ready(out)

    # Reference check against plain JAX.
    ref = jnp.tanh(x * x * x)
    assert out.shape == x.shape
    assert jnp.allclose(out, ref, atol=1e-6, rtol=1e-6)

    print("KERNEL_OK")
</pallas_src>

<mosaic_0001>
module attributes {stable_mosaic.version = 11 : i64} {
  func.func @tanh3_kernel(%arg0: i32, %arg1: memref<4x512xf32, #tpu.memory_space<vmem>>, %arg2: memref<4x512xf32, #tpu.memory_space<vmem>>) attributes {dimension_semantics = [#tpu.dimension_semantics<parallel>], iteration_bounds = array<i64: 1>, scalar_prefetch = 0 : i64, scratch_operands = 0 : i64, tpu.core_type = #tpu.core_type<tc>, window_params = [{transform_indices = @transform_0, window_bounds = array<i64: 4, 512>}, {transform_indices = @transform_1, window_bounds = array<i64: 4, 512>}]} {
    %c0 = arith.constant 0 : index
    %c0_0 = arith.constant 0 : index
    %0 = vector.load %arg1[%c0, %c0_0] : memref<4x512xf32, #tpu.memory_space<vmem>>, vector<4x512xf32>
    %1 = arith.mulf %0, %0 : vector<4x512xf32>
    %2 = arith.mulf %1, %0 : vector<4x512xf32>
    %3 = math.tanh %2 : vector<4x512xf32>
    %c0_1 = arith.constant 0 : index
    %c0_2 = arith.constant 0 : index
    %4 = vector.load %arg2[%c0_1, %c0_2] : memref<4x512xf32, #tpu.memory_space<vmem>>, vector<4x512xf32>
    tpu.vector_store %arg2[%c0_1, %c0_2], %3 {strides = array<i32>} : memref<4x512xf32, #tpu.memory_space<vmem>>, vector<4x512xf32>,
    return
  }
  func.func @transform_0(%arg0: i32) -> (i32, i32) {
    %c0_i32 = arith.constant 0 : i32
    %c0_i32_0 = arith.constant 0 : i32
    return %arg0, %c0_i32 : i32, i32
  }
  func.func @transform_1(%arg0: i32) -> (i32, i32) {
    %c0_i32 = arith.constant 0 : i32
    %c0_i32_0 = arith.constant 0 : i32
    return %arg0, %c0_i32 : i32, i32
  }
}

</mosaic_0001>

<llo_original>
// kernel: tpu_custom_call.1
$region0: #{tpu_custom_call.1}
  #allocation0 [shape = 'u32[]', space=smem, size = 0x4, offset = 0x4, fixed_abs, tag = 'smem constant byte address 0x4 - core index']
  #allocation1 [shape = 'u32[144,128]{1,0:T(1,128)}', space=vmem, size = 0x12000, scoped, tag = 'internal scratch']
  %s0 = inlined_call_operand.hbm [shape: f32[4,512], index: 0, kind: input, shape index: {}]
  %s1 = inlined_call_operand.hbm [shape: f32[4,512], index: 1, kind: output, shape index: {}]
  %s2 = sld [smem:[#allocation0]]
  $region18: #{tpu_custom_call.1} parent=0
    _
  %s4 = ssub.s32 1, %s2
  %s5 = scalar_select 0, %s4, %s2
  $region1: #{tpu_custom_call.1} parent=0
    #allocation2 [shape = 'u8[8192]{0}', space=vmem, size = 0x2000, scoped, tag = 'input window, operand 0, single buffered']
    #allocation3 [shape = 's32[1]{0}', space=sflag, size = 0x4, scoped, tag = 'scoped memory for tpu_custom_call.1']
    #allocation4 [shape = 's32[1]{0}', space=sflag, size = 0x4, scoped, tag = 'scoped memory for tpu_custom_call.1']
    #allocation5 [shape = 'u8[8192]{0}', space=vmem, size = 0x2000, scoped, tag = 'output window, operand 0, single buffered']
    %6 = vsyncpa [#allocation3], 0
    %7 = vsyncpa [#allocation4], 0
    // Predicated region
    $region2: #{tpu_custom_call.1} parent=1 // pred_check
      _
    $region3: #{tpu_custom_call.1} parent=1 // pred_check_branch
      %9 = sbr.rel (0) target = $region5
    $region4: #{tpu_custom_call.1} parent=1 // pred_region
      %s11 = ssub.s32 256, 256
      %12 = vsyncadd [#allocation3], %s11
      %s14 = sshll.u32 [#allocation2], 4
      %s15 = int_to_ptr.vmem [resolvable:$true] %s14
      %17 = dma.hbm_to_vmem [thread:$0]  %s0, 256, %s15, [#allocation3]
    $region5: #{tpu_custom_call.1} parent=1 // pred_fallthru
      _
    // Predicated region
    $region6: #{tpu_custom_call.1} parent=1 // pred_check
      _
    $region7: #{tpu_custom_call.1} parent=1 // pred_check_branch
      %19 = sbr.rel (0) target = $region9
    $region8: #{tpu_custom_call.1} parent=1 // pred_region
      %20 = dma.done [#allocation3], 256
    $region9: #{tpu_custom_call.1} parent=1 // pred_fallthru
      _
    %v21 = vld [vmem:[#allocation2] sm:$0xff]
    %v22 = vld [vmem:[#allocation2 + $0x8] sm:$0xff]
    %v23 = vmul.f32 %v21, %v21
    %v24 = vmul.f32 %v22, %v22
    %v25 = vmul.f32 %v23, %v21
    %v26 = vmul.f32 %v24, %v22
    %v27 = vtanh.pop %v25
    %v28 = vtanh.pop %v26
    %29 = vst [vmem:[#allocation5] sm:$0xff] %v27
    %30 = vst [vmem:[#allocation5 + $0x8] sm:$0xff] %v28
    // Predicated region
    $region10: #{tpu_custom_call.1} parent=1 // pred_check
      _
    $region11: #{tpu_custom_call.1} parent=1 // pred_check_branch
      %32 = sbr.rel (0) target = $region13
    $region12: #{tpu_custom_call.1} parent=1 // pred_region
      %s34 = ssub.s32 256, 256
      %35 = vsyncadd [#allocation4], %s34
      %s37 = sshll.u32 [#allocation5], 4
      %s38 = int_to_ptr.vmem [resolvable:$true] %s37
      %40 = dma.vmem_to_hbm [thread:$0]  %s38, 256, %s1, [#allocation4]
    $region13: #{tpu_custom_call.1} parent=1 // pred_fallthru
      _
    // Predicated region
    $region14: #{tpu_custom_call.1} parent=1 // pred_check
      _
    $region15: #{tpu_custom_call.1} parent=1 // pred_check_branch
      %42 = sbr.rel (0) target = $region17
    $region16: #{tpu_custom_call.1} parent=1 // pred_region
      %43 = dma.done [#allocation4], 256
    $region17: #{tpu_custom_call.1} parent=1 // pred_fallthru
      _
    %44 = vsyncpa [#allocation3], 1
    %45 = vsyncpa [#allocation4], 1

</llo_original>
